<compile_context>
chip_gen: v7x
topology: tpu7x:2x2x1
jax: 0.10.0
libtpu: 0.0.40
codegen_flags: <defaults>
</compile_context>

<pallas_src>
import jax
import jax.numpy as jnp
from jax.experimental import pallas as pl
from jax.experimental.pallas import tpu as pltpu


def _round_up(x, m):
    return ((x + m - 1) // m) * m


def _task_cls_branch_kernel(x_ref, w1_ref, b1_ref, w2_ref, b2_ref,
                            w3_ref, b3_ref, o_ref):
    # fc1 + bias + ReLU (MXU matmul, f32 accumulation)
    h1 = jnp.dot(x_ref[...], w1_ref[...], preferred_element_type=jnp.float32)
    h1 = jnp.maximum(h1 + b1_ref[...], 0.0)
    # dropout (p=0.5) is identity in eval mode.
    # TODO(synk): training-mode dropout would need pltpu.prng_seed / prng_random_bits.

    # fc2 + bias + ReLU
    h2 = jnp.dot(h1.astype(w2_ref.dtype), w2_ref[...],
                 preferred_element_type=jnp.float32)
    h2 = jnp.maximum(h2 + b2_ref[...], 0.0)

    # fc3 (output dim padded to a lane-dense 128 so the store is an unmasked vst)
    out = jnp.dot(h2.astype(w3_ref.dtype), w3_ref[...],
                  preferred_element_type=jnp.float32)
    o_ref[...] = (out + b3_ref[...]).astype(o_ref.dtype)


def prepare_task_cls_params(w1, b1, w2, b2, w3, b3,
                            compute_dtype=jnp.bfloat16):
    """One-time (init-time) parameter prep.

    - zero-pads fc3 weight/bias out-dim to a lane-dense multiple of 128
    - casts weights to the MXU operand dtype (biases stay f32)

    Call once and reuse the returned tuple; doing this per forward pass would
    re-materialize ~0.5-1 MiB of weight copies in HBM on every call.
    """
    d_out = w3.shape[1]
    d_out_pad = _round_up(max(d_out, 128), 128)
    if d_out_pad != d_out:
        w3 = jnp.pad(w3, ((0, 0), (0, d_out_pad - d_out)))
        b3 = jnp.pad(b3, ((0, 0), (0, d_out_pad - d_out)))
    params = (w1.astype(compute_dtype), b1.astype(jnp.float32),
              w2.astype(compute_dtype), b2.astype(jnp.float32),
              w3.astype(compute_dtype), b3.astype(jnp.float32))
    return params, d_out


def task_cls_branch(x, params, d_out, *, tile_b=None):
    """Fused 3-layer MLP: relu(x@w1+b1) -> relu(.@w2+b2) -> .@w3+b3.

    `params` comes from prepare_task_cls_params (pre-padded, pre-cast).
    """
    w1, b1, w2, b2, w3, b3 = params
    B, d_in = x.shape
    d_h = w1.shape[1]
    d_out_pad = w3.shape[1]
    out_dtype = x.dtype
    compute_dtype = w1.dtype

    # --- batch tiling (sublane multiple of 8) --------------------------------
    if tile_b is None:
        # Small B: one grid step (no per-step overhead, full MXU M per push).
        # Large B: MXU-slab aligned tiles, amortizing grid overhead ~32x.
        tile_b = _round_up(B, 8) if B <= 256 else 256
    tile_b = _round_up(max(8, min(tile_b, _round_up(B, 8))), 8)
    b_pad = _round_up(B, tile_b)
    if b_pad != B:
        x = jnp.pad(x, ((0, b_pad - B), (0, 0)))
    n_tiles = b_pad // tile_b

    x = x.astype(compute_dtype)

    # Grid-invariant operands: constant block index + single buffer (no wasted
    # second VMEM copy for tensors whose block never changes).
    def const(shape):
        return pl.BlockSpec(shape, lambda i: (0, 0),
                            pipeline_mode=pl.Buffered(1))

    bytes_accessed = (
        x.size * x.dtype.itemsize
        + w1.size * w1.dtype.itemsize
        + w2.size * w2.dtype.itemsize
        + w3.size * w3.dtype.itemsize
        + (b1.size + b2.size + b3.size) * 4
        + b_pad * d_out_pad * jnp.dtype(out_dtype).itemsize)
    cost = pl.CostEstimate(
        flops=2 * b_pad * (d_in * d_h + d_h * d_h + d_h * d_out_pad),
        transcendentals=0,
        bytes_accessed=int(bytes_accessed))

    # Weight DMA dominates at tiny tile counts: sharding the batch axis over
    # v7x's 2 TensorCores would double the resident-weight HBM reads, so only
    # mark it parallel when there are enough tiles for x/out traffic to win.
    dim_sem = ("parallel",) if n_tiles >= 4 else ("arbitrary",)

    out_padded = pl.pallas_call(
        _task_cls_branch_kernel,
        out_shape=jax.ShapeDtypeStruct((b_pad, d_out_pad), out_dtype),
        grid_spec=pltpu.PrefetchScalarGridSpec(
            num_scalar_prefetch=0,
            grid=(n_tiles,),
            in_specs=[
                pl.BlockSpec((tile_b, d_in), lambda i: (i, 0)),  # x tile (pipelined)
                const((d_in, d_h)),        # w1 (resident)
                const((1, d_h)),           # b1 (resident)
                const((d_h, d_h)),         # w2 (resident)
                const((1, d_h)),           # b2 (resident)
                const((d_h, d_out_pad)),   # w3 (lane-dense padded, resident)
                const((1, d_out_pad)),     # b3 (padded, resident)
            ],
            out_specs=pl.BlockSpec((tile_b, d_out_pad), lambda i: (i, 0)),
        ),
        compiler_params=pltpu.CompilerParams(dimension_semantics=dim_sem),
        cost_estimate=cost,
    )(x, w1, b1, w2, b2, w3, b3)

    return out_padded[:B, :d_out]


def reference(x, w1, b1, w2, b2, w3, b3, compute_dtype=jnp.float32):
    cd = compute_dtype
    h1 = jnp.maximum(
        jnp.dot(x.astype(cd), w1.astype(cd),
                preferred_element_type=jnp.float32) + b1, 0.0)
    h2 = jnp.maximum(
        jnp.dot(h1.astype(cd), w2.astype(cd),
                preferred_element_type=jnp.float32) + b2, 0.0)
    return jnp.dot(h2.astype(cd), w3.astype(cd),
                   preferred_element_type=jnp.float32) + b3


if __name__ == "__main__":
    # Module defaults: input_dim=512, hidden_dim=256, output_dim=4.
    B, D_IN, D_H, D_OUT = 48, 512, 256, 4

    key = jax.random.PRNGKey(0)
    kx, k1, k2, k3, kb1, kb2, kb3 = jax.random.split(key, 7)

    x = jax.random.normal(kx, (B, D_IN), dtype=jnp.float32)

    # Deterministic synthetic parameters (not loading a checkpoint).
    w1 = jax.random.normal(k1, (D_IN, D_H), dtype=jnp.float32) * 0.05
    b1 = jax.random.normal(kb1, (1, D_H), dtype=jnp.float32) * 0.05
    w2 = jax.random.normal(k2, (D_H, D_H), dtype=jnp.float32) * 0.05
    b2 = jax.random.normal(kb2, (1, D_H), dtype=jnp.float32) * 0.05
    w3 = jax.random.normal(k3, (D_H, D_OUT), dtype=jnp.float32) * 0.05
    b3 = jax.random.normal(kb3, (1, D_OUT), dtype=jnp.float32) * 0.05

    # --- default path: bf16 MXU operands, f32 accumulation, single grid step.
    params_bf16, d_out = prepare_task_cls_params(
        w1, b1, w2, b2, w3, b3, compute_dtype=jnp.bfloat16)
    out_bf16 = task_cls_branch(x, params_bf16, d_out)   # tile_b auto -> 48, grid=(1,)
    jax.block_until_ready(out_bf16)
    ref_bf16 = reference(x, w1, b1, w2, b2, w3, b3, compute_dtype=jnp.bfloat16)
    assert out_bf16.shape == (B, D_OUT)
    assert jnp.allclose(out_bf16, ref_bf16, atol=2e-2, rtol=2e-2)

    # --- f32 path (exact module semantics).
    params_f32, _ = prepare_task_cls_params(
        w1, b1, w2, b2, w3, b3, compute_dtype=jnp.float32)
    out_f32 = task_cls_branch(x, params_f32, d_out)
    jax.block_until_ready(out_f32)
    ref_f32 = reference(x, w1, b1, w2, b2, w3, b3)
    assert out_f32.shape == (B, D_OUT)
    assert jnp.allclose(out_f32, ref_f32, atol=1e-4, rtol=1e-4)

    print("KERNEL_OK")
</pallas_src>

<mosaic_0001>
module attributes {stable_mosaic.version = 11 : i64} {
  func.func @_task_cls_branch_kernel(%arg0: i32, %arg1: memref<48x512xbf16, #tpu.memory_space<vmem>>, %arg2: memref<512x256xbf16, #tpu.memory_space<vmem>>, %arg3: memref<1x256xf32, #tpu.memory_space<vmem>>, %arg4: memref<256x256xbf16, #tpu.memory_space<vmem>>, %arg5: memref<1x256xf32, #tpu.memory_space<vmem>>, %arg6: memref<256x128xbf16, #tpu.memory_space<vmem>>, %arg7: memref<1x128xf32, #tpu.memory_space<vmem>>, %arg8: memref<48x128xf32, #tpu.memory_space<vmem>>) attributes {dimension_semantics = [#tpu.dimension_semantics<arbitrary>], iteration_bounds = array<i64: 1>, scalar_prefetch = 0 : i64, scratch_operands = 0 : i64, tpu.core_type = #tpu.core_type<tc>, window_params = [{transform_indices = @transform_0, window_bounds = array<i64: 48, 512>}, {pipeline_mode = #tpu.pipeline_mode<synchronous>, transform_indices = @transform_1, window_bounds = array<i64: 512, 256>}, {pipeline_mode = #tpu.pipeline_mode<synchronous>, transform_indices = @transform_2, window_bounds = array<i64: 1, 256>}, {pipeline_mode = #tpu.pipeline_mode<synchronous>, transform_indices = @transform_3, window_bounds = array<i64: 256, 256>}, {pipeline_mode = #tpu.pipeline_mode<synchronous>, transform_indices = @transform_4, window_bounds = array<i64: 1, 256>}, {pipeline_mode = #tpu.pipeline_mode<synchronous>, transform_indices = @transform_5, window_bounds = array<i64: 256, 128>}, {pipeline_mode = #tpu.pipeline_mode<synchronous>, transform_indices = @transform_6, window_bounds = array<i64: 1, 128>}, {transform_indices = @transform_7, window_bounds = array<i64: 48, 128>}]} {
    %c0 = arith.constant 0 : index
    %c0_0 = arith.constant 0 : index
    %0 = vector.load %arg1[%c0, %c0_0] : memref<48x512xbf16, #tpu.memory_space<vmem>>, vector<48x512xbf16>
    %c0_1 = arith.constant 0 : index
    %c0_2 = arith.constant 0 : index
    %1 = vector.load %arg2[%c0_1, %c0_2] : memref<512x256xbf16, #tpu.memory_space<vmem>>, vector<512x256xbf16>
    %cst = arith.constant dense<0.000000e+00> : vector<48x256xf32>
    %2 = tpu.matmul %0, %1, %cst {dimension_numbers = #tpu.dot_dimension_numbers<[1], [0], [0], [1], [0, 0, 1, 1], [], []>} : vector<48x512xbf16>, vector<512x256xbf16>, vector<48x256xf32> -> vector<48x256xf32>
    %c0_3 = arith.constant 0 : index
    %c0_4 = arith.constant 0 : index
    %3 = vector.load %arg3[%c0_3, %c0_4] : memref<1x256xf32, #tpu.memory_space<vmem>>, vector<1x256xf32>
    %4 = vector.broadcast %3 : vector<1x256xf32> to vector<48x256xf32>
    %5 = arith.addf %2, %4 : vector<48x256xf32>
    %cst_5 = arith.constant 0.000000e+00 : f32
    %6 = vector.broadcast %cst_5 : f32 to vector<48x256xf32>
    %7 = arith.maximumf %5, %6 : vector<48x256xf32>
    %8 = arith.truncf %7 : vector<48x256xf32> to vector<48x256xbf16>
    %c0_6 = arith.constant 0 : index
    %c0_7 = arith.constant 0 : index
    %9 = vector.load %arg4[%c0_6, %c0_7] : memref<256x256xbf16, #tpu.memory_space<vmem>>, vector<256x256xbf16>
    %cst_8 = arith.constant dense<0.000000e+00> : vector<48x256xf32>
    %10 = tpu.matmul %8, %9, %cst_8 {dimension_numbers = #tpu.dot_dimension_numbers<[1], [0], [0], [1], [0, 0, 1, 1], [], []>} : vector<48x256xbf16>, vector<256x256xbf16>, vector<48x256xf32> -> vector<48x256xf32>
    %c0_9 = arith.constant 0 : index
    %c0_10 = arith.constant 0 : index
    %11 = vector.load %arg5[%c0_9, %c0_10] : memref<1x256xf32, #tpu.memory_space<vmem>>, vector<1x256xf32>
    %12 = vector.broadcast %11 : vector<1x256xf32> to vector<48x256xf32>
    %13 = arith.addf %10, %12 : vector<48x256xf32>
    %cst_11 = arith.constant 0.000000e+00 : f32
    %14 = vector.broadcast %cst_11 : f32 to vector<48x256xf32>
    %15 = arith.maximumf %13, %14 : vector<48x256xf32>
    %16 = arith.truncf %15 : vector<48x256xf32> to vector<48x256xbf16>
    %c0_12 = arith.constant 0 : index
    %c0_13 = arith.constant 0 : index
    %17 = vector.load %arg6[%c0_12, %c0_13] : memref<256x128xbf16, #tpu.memory_space<vmem>>, vector<256x128xbf16>
    %cst_14 = arith.constant dense<0.000000e+00> : vector<48x128xf32>
    %18 = tpu.matmul %16, %17, %cst_14 {dimension_numbers = #tpu.dot_dimension_numbers<[1], [0], [0], [1], [0, 0, 1, 1], [], []>} : vector<48x256xbf16>, vector<256x128xbf16>, vector<48x128xf32> -> vector<48x128xf32>
    %c0_15 = arith.constant 0 : index
    %c0_16 = arith.constant 0 : index
    %19 = vector.load %arg7[%c0_15, %c0_16] : memref<1x128xf32, #tpu.memory_space<vmem>>, vector<1x128xf32>
    %20 = vector.broadcast %19 : vector<1x128xf32> to vector<48x128xf32>
    %21 = arith.addf %18, %20 : vector<48x128xf32>
    %c0_17 = arith.constant 0 : index
    %c0_18 = arith.constant 0 : index
    %22 = vector.load %arg8[%c0_17, %c0_18] : memref<48x128xf32, #tpu.memory_space<vmem>>, vector<48x128xf32>
    tpu.vector_store %arg8[%c0_17, %c0_18], %21 {strides = array<i32>} : memref<48x128xf32, #tpu.memory_space<vmem>>, vector<48x128xf32>,
    return
  }
  func.func @transform_0(%arg0: i32) -> (i32, i32) {
    %c0_i32 = arith.constant 0 : i32
    %c0_i32_0 = arith.constant 0 : i32
    return %arg0, %c0_i32 : i32, i32
  }
  func.func @transform_1(%arg0: i32) -> (i32, i32) {
    %c0_i32 = arith.constant 0 : i32
    %c0_i32_0 = arith.constant 0 : i32
    %c0_i32_1 = arith.constant 0 : i32
    return %c0_i32, %c0_i32_0 : i32, i32
  }
  func.func @transform_2(%arg0: i32) -> (i32, i32) {
    %c0_i32 = arith.constant 0 : i32
    %c0_i32_0 = arith.constant 0 : i32
    %c0_i32_1 = arith.constant 0 : i32
    return %c0_i32, %c0_i32_0 : i32, i32
  }
  func.func @transform_3(%arg0: i32) -> (i32, i32) {
    %c0_i32 = arith.constant 0 : i32
    %c0_i32_0 = arith.constant 0 : i32
    %c0_i32_1 = arith.constant 0 : i32
    return %c0_i32, %c0_i32_0 : i32, i32
  }
  func.func @transform_4(%arg0: i32) -> (i32, i32) {
    %c0_i32 = arith.constant 0 : i32
    %c0_i32_0 = arith.constant 0 : i32
    %c0_i32_1 = arith.constant 0 : i32
    return %c0_i32, %c0_i32_0 : i32, i32
  }
  func.func @transform_5(%arg0: i32) -> (i32, i32) {
    %c0_i32 = arith.constant 0 : i32
    %c0_i32_0 = arith.constant 0 : i32
    %c0_i32_1 = arith.constant 0 : i32
    return %c0_i32, %c0_i32_0 : i32, i32
  }
  func.func @transform_6(%arg0: i32) -> (i32, i32) {
    %c0_i32 = arith.constant 0 : i32
    %c0_i32_0 = arith.constant 0 : i32
    %c0_i32_1 = arith.constant 0 : i32
    return %c0_i32, %c0_i32_0 : i32, i32
  }
  func.func @transform_7(%arg0: i32) -> (i32, i32) {
    %c0_i32 = arith.constant 0 : i32
    %c0_i32_0 = arith.constant 0 : i32
    return %arg0, %c0_i32 : i32, i32
  }
}

</mosaic_0001>

<llo_original>
// kernel: tpu_custom_call.1
$region0: #{tpu_custom_call.1}
  #allocation0 [shape = 'u32[]', space=smem, size = 0x4, offset = 0x4, fixed_abs, tag = 'smem constant byte address 0x4 - core index']
  #allocation1 [shape = 'u32[144,128]{1,0:T(1,128)}', space=vmem, size = 0x12000, scoped, tag = 'internal scratch']
  %s0 = inlined_call_operand.hbm [shape: bf16[48,512], index: 0, kind: input, shape index: {}]
  %s1 = inlined_call_operand.hbm [shape: bf16[512,256], index: 1, kind: input, shape index: {}]
  %s2 = inlined_call_operand.vmem [shape: f32[1,256], index: 2, kind: input, shape index: {}]
  %s3 = inlined_call_operand.hbm [shape: bf16[256,256], index: 3, kind: input, shape index: {}]
  %s4 = inlined_call_operand.vmem [shape: f32[1,256], index: 4, kind: input, shape index: {}]
  %s5 = inlined_call_operand.hbm [shape: bf16[256,128], index: 5, kind: input, shape index: {}]
  %s6 = inlined_call_operand.vmem [shape: f32[1,128], index: 6, kind: input, shape index: {}]
  %s7 = inlined_call_operand.hbm [shape: f32[48,128], index: 7, kind: output, shape index: {}]
  %s8 = sld [smem:[#allocation0]]
  $region54: #{tpu_custom_call.1} parent=0
    _
  %s10 = ssub.s32 1, %s8
  %s11 = scalar_select 0, %s10, %s8
  $region1: #{tpu_custom_call.1} parent=0
    #allocation2 [shape = 'u8[49152]{0}', space=vmem, size = 0xc000, scoped, tag = 'input window, operand 0, single buffered']
    #allocation3 [shape = 's32[1]{0}', space=sflag, size = 0x4, scoped, tag = 'scoped memory for tpu_custom_call.1']
    #allocation4 [shape = 's32[1]{0}', space=sflag, size = 0x4, scoped, tag = 'scoped memory for tpu_custom_call.1']
    #allocation5 [shape = 'u8[262144]{0}', space=vmem, size = 0x40000, scoped, tag = 'input window, operand 1, single buffered']
    #allocation6 [shape = 's32[1]{0}', space=sflag, size = 0x4, scoped, tag = 'scoped memory for tpu_custom_call.1']
    #allocation7 [shape = 'u8[131072]{0}', space=vmem, size = 0x20000, scoped, tag = 'input window, operand 3, single buffered']
    #allocation8 [shape = 'u8[65536]{0}', space=vmem, size = 0x10000, scoped, tag = 'input window, operand 5, single buffered']
    #allocation9 [shape = 's32[1]{0}', space=sflag, size = 0x4, scoped, tag = 'scoped memory for tpu_custom_call.1']
    #allocation10 [shape = 'u8[24576]{0}', space=vmem, size = 0x6000, scoped, tag = 'output window, operand 0, single buffered']
    %12 = vsyncpa [#allocation3], 0
    %13 = vsyncpa [#allocation6], 0
    %14 = vsyncpa [#allocation9], 0
    %15 = vsyncpa [#allocation4], 0
    // Predicated region
    $region2: #{tpu_custom_call.1} parent=1 // pred_check
      _
    $region3: #{tpu_custom_call.1} parent=1 // pred_check_branch
      %17 = sbr.rel (0) target = $region5
    $region4: #{tpu_custom_call.1} parent=1 // pred_region
      %s19 = ssub.s32 1536, 1536
      %20 = vsyncadd [#allocation3], %s19
      %s21 = sshll.u32 [#allocation2], 4
      %s22 = int_to_ptr.vmem [resolvable:$true] %s21
      %27 = dma.hbm_to_vmem [thread:$0]  %s0, 1536, %s22, [#allocation3], 256, 256, 16
    $region5: #{tpu_custom_call.1} parent=1 // pred_fallthru
      _
    // Predicated region
    $region6: #{tpu_custom_call.1} parent=1 // pred_check
      _
    $region7: #{tpu_custom_call.1} parent=1 // pred_check_branch
      %29 = sbr.rel (0) target = $region9
    $region8: #{tpu_custom_call.1} parent=1 // pred_region
      %s31 = ssub.s32 8192, 8192
      %32 = vsyncadd [#allocation6], %s31
      %s33 = sshll.u32 [#allocation5], 4
      %s34 = int_to_ptr.vmem [resolvable:$true] %s33
      %39 = dma.hbm_to_vmem [thread:$0]  %s1, 8192, %s34, [#allocation6], 128, 128, 8
    $region9: #{tpu_custom_call.1} parent=1 // pred_fallthru
      _
    // Predicated region
    $region10: #{tpu_custom_call.1} parent=1 // pred_check
      _
    $region11: #{tpu_custom_call.1} parent=1 // pred_check_branch
      %41 = sbr.rel (0) target = $region13
    $region12: #{tpu_custom_call.1} parent=1 // pred_region
      _
    $region13: #{tpu_custom_call.1} parent=1 // pred_fallthru
      _
    // Predicated region
    $region14: #{tpu_custom_call.1} parent=1 // pred_check
      _
    $region15: #{tpu_custom_call.1} parent=1 // pred_check_branch
      %43 = sbr.rel (0) target = $region17
    $region16: #{tpu_custom_call.1} parent=1 // pred_region
      %s45 = ssub.s32 4096, 4096
      %46 = vsyncadd [#allocation6], %s45
      %s47 = sshll.u32 [#allocation7], 4
      %s48 = int_to_ptr.vmem [resolvable:$true] %s47
      %53 = dma.hbm_to_vmem [thread:$0]  %s3, 4096, %s48, [#allocation6], 128, 128, 8
    $region17: #{tpu_custom_call.1} parent=1 // pred_fallthru
      _
    // Predicated region
    $region18: #{tpu_custom_call.1} parent=1 // pred_check
      _
    $region19: #{tpu_custom_call.1} parent=1 // pred_check_branch
      %55 = sbr.rel (0) target = $region21
    $region20: #{tpu_custom_call.1} parent=1 // pred_region
      _
    $region21: #{tpu_custom_call.1} parent=1 // pred_fallthru
      _
    // Predicated region
    $region22: #{tpu_custom_call.1} parent=1 // pred_check
      _
    $region23: #{tpu_custom_call.1} parent=1 // pred_check_branch
      %57 = sbr.rel (0) target = $region25
    $region24: #{tpu_custom_call.1} parent=1 // pred_region
      %s59 = ssub.s32 2048, 2048
      %60 = vsyncadd [#allocation9], %s59
      %s61 = sshll.u32 [#allocation8], 4
      %s62 = int_to_ptr.vmem [resolvable:$true] %s61
      %67 = dma.hbm_to_vmem [thread:$0]  %s5, 2048, %s62, [#allocation9], 64, 64, 4
    $region25: #{tpu_custom_call.1} parent=1 // pred_fallthru
      _
    // Predicated region
    $region26: #{tpu_custom_call.1} parent=1 // pred_check
      _
    $region27: #{tpu_custom_call.1} parent=1 // pred_check_branch
      %69 = sbr.rel (0) target = $region29
    $region28: #{tpu_custom_call.1} parent=1 // pred_region
      _
    $region29: #{tpu_custom_call.1} parent=1 // pred_fallthru
      _
    // Predicated region
    $region30: #{tpu_custom_call.1} parent=1 // pred_check
      _
    $region31: #{tpu_custom_call.1} parent=1 // pred_check_branch
      %71 = sbr.rel (0) target = $region33
    $region32: #{tpu_custom_call.1} parent=1 // pred_region
      %72 = dma.done [#allocation3], 1536
    $region33: #{tpu_custom_call.1} parent=1 // pred_fallthru
      _
    // Predicated region
    $region34: #{tpu_custom_call.1} parent=1 // pred_check
      _
    $region35: #{tpu_custom_call.1} parent=1 // pred_check_branch
      %74 = sbr.rel (0) target = $region37
    $region36: #{tpu_custom_call.1} parent=1 // pred_region
      %75 = dma.done [#allocation6], 8192
    $region37: #{tpu_custom_call.1} parent=1 // pred_fallthru
      _
    // Predicated region
    $region38: #{tpu_custom_call.1} parent=1 // pred_check
      _
    $region39: #{tpu_custom_call.1} parent=1 // pred_check_branch
      %77 = sbr.rel (0) target = $region41
    $region40: #{tpu_custom_call.1} parent=1 // pred_region
      %78 = dma.done [#allocation6], 4096
    $region41: #{tpu_custom_call.1} parent=1 // pred_fallthru
      _
    // Predicated region
    $region42: #{tpu_custom_call.1} parent=1 // pred_check
      _
    $region43: #{tpu_custom_call.1} parent=1 // pred_check_branch
      %80 = sbr.rel (0) target = $region45
    $region44: #{tpu_custom_call.1} parent=1 // pred_region
      %81 = dma.done [#allocation9], 2048
    $region45: #{tpu_custom_call.1} parent=1 // pred_fallthru
      _
    %v83 = vld [vmem:[#allocation2] sm:$0xff]
    %v84 = vld [vmem:[#allocation2 + $0x8] sm:$0xff]
    %v85 = vld [vmem:[#allocation2 + $0x10] sm:$0xff]
    %v86 = vld [vmem:[#allocation2 + $0x18] sm:$0xff]
    %v87 = vld [vmem:[#allocation2 + $0x20] sm:$0xff]
    %v88 = vld [vmem:[#allocation2 + $0x28] sm:$0xff]
    %v89 = vld [vmem:[#allocation2 + $0x30] sm:$0xff]
    %v90 = vld [vmem:[#allocation2 + $0x38] sm:$0xff]
    %v91 = vld [vmem:[#allocation2 + $0x40] sm:$0xff]
    %v92 = vld [vmem:[#allocation2 + $0x48] sm:$0xff]
    %v93 = vld [vmem:[#allocation2 + $0x50] sm:$0xff]
    %v94 = vld [vmem:[#allocation2 + $0x58] sm:$0xff]
    %v95 = vld [vmem:[#allocation5] sm:$0xff]
    %v96 = vld [vmem:[#allocation5 + $0x8] sm:$0xff]
    %v97 = vld [vmem:[#allocation5 + $0x10] sm:$0xff]
    %v98 = vld [vmem:[#allocation5 + $0x18] sm:$0xff]
    %v99 = vld [vmem:[#allocation5 + $0x20] sm:$0xff]
    %v100 = vld [vmem:[#allocation5 + $0x28] sm:$0xff]
    %v101 = vld [vmem:[#allocation5 + $0x30] sm:$0xff]
    %v102 = vld [vmem:[#allocation5 + $0x38] sm:$0xff]
    %v103 = vld [vmem:[#allocation5 + $0x40] sm:$0xff]
    %v104 = vld [vmem:[#allocation5 + $0x48] sm:$0xff]
    %v105 = vld [vmem:[#allocation5 + $0x50] sm:$0xff]
    %v106 = vld [vmem:[#allocation5 + $0x58] sm:$0xff]
    %v107 = vld [vmem:[#allocation5 + $0x60] sm:$0xff]
    %v108 = vld [vmem:[#allocation5 + $0x68] sm:$0xff]
    %v109 = vld [vmem:[#allocation5 + $0x70] sm:$0xff]
    %v110 = vld [vmem:[#allocation5 + $0x78] sm:$0xff]
    %v111 = vld [vmem:[#allocation5 + $0x80] sm:$0xff]
    %v112 = vld [vmem:[#allocation5 + $0x88] sm:$0xff]
    %v113 = vld [vmem:[#allocation5 + $0x90] sm:$0xff]
    %v114 = vld [vmem:[#allocation5 + $0x98] sm:$0xff]
    %v115 = vld [vmem:[#allocation5 + $0xa0] sm:$0xff]
    %v116 = vld [vmem:[#allocation5 + $0xa8] sm:$0xff]
    %v117 = vld [vmem:[#allocation5 + $0xb0] sm:$0xff]
    %v118 = vld [vmem:[#allocation5 + $0xb8] sm:$0xff]
    %v119 = vld [vmem:[#allocation5 + $0xc0] sm:$0xff]
    %v120 = vld [vmem:[#allocation5 + $0xc8] sm:$0xff]
    %v121 = vld [vmem:[#allocation5 + $0xd0] sm:$0xff]
    %v122 = vld [vmem:[#allocation5 + $0xd8] sm:$0xff]
    %v123 = vld [vmem:[#allocation5 + $0xe0] sm:$0xff]
    %v124 = vld [vmem:[#allocation5 + $0xe8] sm:$0xff]
    %v125 = vld [vmem:[#allocation5 + $0xf0] sm:$0xff]
    %v126 = vld [vmem:[#allocation5 + $0xf8] sm:$0xff]
    %v127 = vld [vmem:[#allocation5 + $0x100] sm:$0xff]
    %v128 = vld [vmem:[#allocation5 + $0x108] sm:$0xff]
    %v129 = vld [vmem:[#allocation5 + $0x110] sm:$0xff]
    %v130 = vld [vmem:[#allocation5 + $0x118] sm:$0xff]
    %v131 = vld [vmem:[#allocation5 + $0x120] sm:$0xff]
    %v132 = vld [vmem:[#allocation5 + $0x128] sm:$0xff]
    %v133 = vld [vmem:[#allocation5 + $0x130] sm:$0xff]
    %v134 = vld [vmem:[#allocation5 + $0x138] sm:$0xff]
    %v135 = vld [vmem:[#allocation5 + $0x140] sm:$0xff]
    %v136 = vld [vmem:[#allocation5 + $0x148] sm:$0xff]
    %v137 = vld [vmem:[#allocation5 + $0x150] sm:$0xff]
    %v138 = vld [vmem:[#allocation5 + $0x158] sm:$0xff]
    %v139 = vld [vmem:[#allocation5 + $0x160] sm:$0xff]
    %v140 = vld [vmem:[#allocation5 + $0x168] sm:$0xff]
    %v141 = vld [vmem:[#allocation5 + $0x170] sm:$0xff]
    %v142 = vld [vmem:[#allocation5 + $0x178] sm:$0xff]
    %v143 = vld [vmem:[#allocation5 + $0x180] sm:$0xff]
    %v144 = vld [vmem:[#allocation5 + $0x188] sm:$0xff]
    %v145 = vld [vmem:[#allocation5 + $0x190] sm:$0xff]
    %v146 = vld [vmem:[#allocation5 + $0x198] sm:$0xff]
    %v147 = vld [vmem:[#allocation5 + $0x1a0] sm:$0xff]
    %v148 = vld [vmem:[#allocation5 + $0x1a8] sm:$0xff]
    %v149 = vld [vmem:[#allocation5 + $0x1b0] sm:$0xff]
    %v150 = vld [vmem:[#allocation5 + $0x1b8] sm:$0xff]
    %v151 = vld [vmem:[#allocation5 + $0x1c0] sm:$0xff]
    %v152 = vld [vmem:[#allocation5 + $0x1c8] sm:$0xff]
    %v153 = vld [vmem:[#allocation5 + $0x1d0] sm:$0xff]
    %v154 = vld [vmem:[#allocation5 + $0x1d8] sm:$0xff]
    %v155 = vld [vmem:[#allocation5 + $0x1e0] sm:$0xff]
    %v156 = vld [vmem:[#allocation5 + $0x1e8] sm:$0xff]
    %v157 = vld [vmem:[#allocation5 + $0x1f0] sm:$0xff]
    %v158 = vld [vmem:[#allocation5 + $0x1f8] sm:$0xff]
    %v159 = vld [vmem:[%s2] sm:$0x3]
    %v161 = vlaneseq
    %v162 = vshrl.u32 %v161, 7
    %v163 = vsub.s32 0, %v162
    %v164 = vrot.slane %v159, %v163
    %v165 = vlaneseq
    %v166 = vshrl.u32 %v165, 7
    %v167 = vsub.s32 1, %v166
    %v168 = vrot.slane %v159, %v167
    %v183 = vunpack.c.l.b16 %v83
    %v184 = vunpack.c.h.b16 %v83
    %v185 = vunpack.c.l.b16 %v84
    %v186 = vunpack.c.h.b16 %v84
    %v187 = vunpack.c.l.b16 %v85
    %v188 = vunpack.c.h.b16 %v85
    %v189 = vunpack.c.l.b16 %v86
    %v190 = vunpack.c.h.b16 %v86
    %v191 = vunpack.c.l.b16 %v87
    %v192 = vunpack.c.h.b16 %v87
    %v193 = vunpack.c.l.b16 %v88
    %v194 = vunpack.c.h.b16 %v88
    %v195 = vunpack.c.l.b16 %v89
    %v196 = vunpack.c.h.b16 %v89
    %v197 = vunpack.c.l.b16 %v90
    %v198 = vunpack.c.h.b16 %v90
    %v199 = vunpack.c.l.b16 %v91
    %v200 = vunpack.c.h.b16 %v91
    %v201 = vunpack.c.l.b16 %v92
    %v202 = vunpack.c.h.b16 %v92
    %v203 = vunpack.c.l.b16 %v93
    %v204 = vunpack.c.h.b16 %v93
    %v205 = vunpack.c.l.b16 %v94
    %v206 = vunpack.c.h.b16 %v94
    %v207 = vpack.c.b16 %v187, %v183
    %v208 = vpack.c.b16 %v188, %v184
    %v209 = vpack.c.b16 %v189, %v185
    %v210 = vpack.c.b16 %v190, %v186
    %v211 = vpack.c.b16 %v195, %v191
    %v212 = vpack.c.b16 %v196, %v192
    %v213 = vpack.c.b16 %v197, %v193
    %v214 = vpack.c.b16 %v198, %v194
    %v215 = vpack.c.b16 %v203, %v199
    %v216 = vpack.c.b16 %v204, %v200
    %v217 = vpack.c.b16 %v205, %v201
    %v218 = vpack.c.b16 %v206, %v202
    %v295 = vunpack.c.l.b16 %v95
    %v296 = vunpack.c.h.b16 %v95
    %v297 = vunpack.c.l.b16 %v96
    %v298 = vunpack.c.h.b16 %v96
    %v299 = vunpack.c.l.b16 %v97
    %v300 = vunpack.c.h.b16 %v97
    %v301 = vunpack.c.l.b16 %v98
    %v302 = vunpack.c.h.b16 %v98
    %v303 = vunpack.c.l.b16 %v99
    %v304 = vunpack.c.h.b16 %v99
    %v305 = vunpack.c.l.b16 %v100
    %v306 = vunpack.c.h.b16 %v100
    %v307 = vunpack.c.l.b16 %v101
    %v308 = vunpack.c.h.b16 %v101
    %v309 = vunpack.c.l.b16 %v102
    %v310 = vunpack.c.h.b16 %v102
    %v311 = vunpack.c.l.b16 %v103
    %v312 = vunpack.c.h.b16 %v103
    %v313 = vunpack.c.l.b16 %v104
    %v314 = vunpack.c.h.b16 %v104
    %v315 = vunpack.c.l.b16 %v105
    %v316 = vunpack.c.h.b16 %v105
    %v317 = vunpack.c.l.b16 %v106
    %v318 = vunpack.c.h.b16 %v106
    %v319 = vunpack.c.l.b16 %v107
    %v320 = vunpack.c.h.b16 %v107
    %v321 = vunpack.c.l.b16 %v108
    %v322 = vunpack.c.h.b16 %v108
    %v323 = vunpack.c.l.b16 %v109
    %v324 = vunpack.c.h.b16 %v109
    %v325 = vunpack.c.l.b16 %v110
    %v326 = vunpack.c.h.b16 %v110
    %v327 = vunpack.c.l.b16 %v111
    %v328 = vunpack.c.h.b16 %v111
    %v329 = vunpack.c.l.b16 %v112
    %v330 = vunpack.c.h.b16 %v112
    %v331 = vunpack.c.l.b16 %v113
    %v332 = vunpack.c.h.b16 %v113
    %v333 = vunpack.c.l.b16 %v114
    %v334 = vunpack.c.h.b16 %v114
    %v335 = vunpack.c.l.b16 %v115
    %v336 = vunpack.c.h.b16 %v115
    %v337 = vunpack.c.l.b16 %v116
    %v338 = vunpack.c.h.b16 %v116
    %v339 = vunpack.c.l.b16 %v117
    %v340 = vunpack.c.h.b16 %v117
    %v341 = vunpack.c.l.b16 %v118
    %v342 = vunpack.c.h.b16 %v118
    %v343 = vunpack.c.l.b16 %v119
    %v344 = vunpack.c.h.b16 %v119
    %v345 = vunpack.c.l.b16 %v120
    %v346 = vunpack.c.h.b16 %v120
    %v347 = vunpack.c.l.b16 %v121
    %v348 = vunpack.c.h.b16 %v121
    %v349 = vunpack.c.l.b16 %v122
    %v350 = vunpack.c.h.b16 %v122
    %v351 = vunpack.c.l.b16 %v123
    %v352 = vunpack.c.h.b16 %v123
    %v353 = vunpack.c.l.b16 %v124
    %v354 = vunpack.c.h.b16 %v124
    %v355 = vunpack.c.l.b16 %v125
    %v356 = vunpack.c.h.b16 %v125
    %v357 = vunpack.c.l.b16 %v126
    %v358 = vunpack.c.h.b16 %v126
    %v359 = vunpack.c.l.b16 %v127
    %v360 = vunpack.c.h.b16 %v127
    %v361 = vunpack.c.l.b16 %v128
    %v362 = vunpack.c.h.b16 %v128
    %v363 = vunpack.c.l.b16 %v129
    %v364 = vunpack.c.h.b16 %v129
    %v365 = vunpack.c.l.b16 %v130
    %v366 = vunpack.c.h.b16 %v130
    %v367 = vunpack.c.l.b16 %v131
    %v368 = vunpack.c.h.b16 %v131
    %v369 = vunpack.c.l.b16 %v132
    %v370 = vunpack.c.h.b16 %v132
    %v371 = vunpack.c.l.b16 %v133
    %v372 = vunpack.c.h.b16 %v133
    %v373 = vunpack.c.l.b16 %v134
    %v374 = vunpack.c.h.b16 %v134
    %v375 = vunpack.c.l.b16 %v135
    %v376 = vunpack.c.h.b16 %v135
    %v377 = vunpack.c.l.b16 %v136
    %v378 = vunpack.c.h.b16 %v136
    %v379 = vunpack.c.l.b16 %v137
    %v380 = vunpack.c.h.b16 %v137
    %v381 = vunpack.c.l.b16 %v138
    %v382 = vunpack.c.h.b16 %v138
    %v383 = vunpack.c.l.b16 %v139
    %v384 = vunpack.c.h.b16 %v139
    %v385 = vunpack.c.l.b16 %v140
    %v386 = vunpack.c.h.b16 %v140
    %v387 = vunpack.c.l.b16 %v141
    %v388 = vunpack.c.h.b16 %v141
    %v389 = vunpack.c.l.b16 %v142
    %v390 = vunpack.c.h.b16 %v142
    %v391 = vunpack.c.l.b16 %v143
    %v392 = vunpack.c.h.b16 %v143
    %v393 = vunpack.c.l.b16 %v144
    %v394 = vunpack.c.h.b16 %v144
    %v395 = vunpack.c.l.b16 %v145
    %v396 = vunpack.c.h.b16 %v145
    %v397 = vunpack.c.l.b16 %v146
    %v398 = vunpack.c.h.b16 %v146
    %v399 = vunpack.c.l.b16 %v147
    %v400 = vunpack.c.h.b16 %v147
    %v401 = vunpack.c.l.b16 %v148
    %v402 = vunpack.c.h.b16 %v148
    %v403 = vunpack.c.l.b16 %v149
    %v404 = vunpack.c.h.b16 %v149
    %v405 = vunpack.c.l.b16 %v150
    %v406 = vunpack.c.h.b16 %v150
    %v407 = vunpack.c.l.b16 %v151
    %v408 = vunpack.c.h.b16 %v151
    %v409 = vunpack.c.l.b16 %v152
    %v410 = vunpack.c.h.b16 %v152
    %v411 = vunpack.c.l.b16 %v153
    %v412 = vunpack.c.h.b16 %v153
    %v413 = vunpack.c.l.b16 %v154
    %v414 = vunpack.c.h.b16 %v154
    %v415 = vunpack.c.l.b16 %v155
    %v416 = vunpack.c.h.b16 %v155
    %v417 = vunpack.c.l.b16 %v156
    %v418 = vunpack.c.h.b16 %v156
    %v419 = vunpack.c.l.b16 %v157
    %v420 = vunpack.c.h.b16 %v157
    %v421 = vunpack.c.l.b16 %v158
    %v422 = vunpack.c.h.b16 %v158
    %v423 = vpack.c.b16 %v297, %v295
    %v424 = vpack.c.b16 %v298, %v296
    %v425 = vpack.c.b16 %v301, %v299
    %v426 = vpack.c.b16 %v302, %v300
    %v427 = vpack.c.b16 %v305, %v303
    %v428 = vpack.c.b16 %v306, %v304
    %v429 = vpack.c.b16 %v309, %v307
    %v430 = vpack.c.b16 %v310, %v308
    %v431 = vpack.c.b16 %v313, %v311
    %v432 = vpack.c.b16 %v314, %v312
    %v433 = vpack.c.b16 %v317, %v315
    %v434 = vpack.c.b16 %v318, %v316
    %v435 = vpack.c.b16 %v321, %v319
    %v436 = vpack.c.b16 %v322, %v320
    %v437 = vpack.c.b16 %v325, %v323
    %v438 = vpack.c.b16 %v326, %v324
    %v439 = vpack.c.b16 %v329, %v327
    %v440 = vpack.c.b16 %v330, %v328
    %v441 = vpack.c.b16 %v333, %v331
    %v442 = vpack.c.b16 %v334, %v332
    %v443 = vpack.c.b16 %v337, %v335
    %v444 = vpack.c.b16 %v338, %v336
    %v445 = vpack.c.b16 %v341, %v339
    %v446 = vpack.c.b16 %v342, %v340
    %v447 = vpack.c.b16 %v345, %v343
    %v448 = vpack.c.b16 %v346, %v344
    %v449 = vpack.c.b16 %v349, %v347
    %v450 = vpack.c.b16 %v350, %v348
    %v451 = vpack.c.b16 %v353, %v351
    %v452 = vpack.c.b16 %v354, %v352
    %v453 = vpack.c.b16 %v357, %v355
    %v454 = vpack.c.b16 %v358, %v356
    %v455 = vpack.c.b16 %v361, %v359
    %v456 = vpack.c.b16 %v362, %v360
    %v457 = vpack.c.b16 %v365, %v363
    %v458 = vpack.c.b16 %v366, %v364
    %v459 = vpack.c.b16 %v369, %v367
    %v460 = vpack.c.b16 %v370, %v368
    %v461 = vpack.c.b16 %v373, %v371
    %v462 = vpack.c.b16 %v374, %v372
    %v463 = vpack.c.b16 %v377, %v375
    %v464 = vpack.c.b16 %v378, %v376
    %v465 = vpack.c.b16 %v381, %v379
    %v466 = vpack.c.b16 %v382, %v380
    %v467 = vpack.c.b16 %v385, %v383
    %v468 = vpack.c.b16 %v386, %v384
    %v469 = vpack.c.b16 %v389, %v387
    %v470 = vpack.c.b16 %v390, %v388
    %v471 = vpack.c.b16 %v393, %v391
    %v472 = vpack.c.b16 %v394, %v392
    %v473 = vpack.c.b16 %v397, %v395
    %v474 = vpack.c.b16 %v398, %v396
    %v475 = vpack.c.b16 %v401, %v399
    %v476 = vpack.c.b16 %v402, %v400
    %v477 = vpack.c.b16 %v405, %v403
    %v478 = vpack.c.b16 %v406, %v404
    %v479 = vpack.c.b16 %v409, %v407
    %v480 = vpack.c.b16 %v410, %v408
    %v481 = vpack.c.b16 %v413, %v411
    %v482 = vpack.c.b16 %v414, %v412
    %v483 = vpack.c.b16 %v417, %v415
    %v484 = vpack.c.b16 %v418, %v416
    %v485 = vpack.c.b16 %v421, %v419
    %v486 = vpack.c.b16 %v422, %v420
    %551 = vmatprep.subr.bf16.mxu0 %v424
    %552 = vmatpush1.bf16.msra.mxu0 %v423
    %553 = vmatprep.subr.bf16.mxu0 %v426
    %554 = vmatpush1.bf16.msra.mxu0 %v425
    %555 = vmatprep.subr.bf16.mxu0 %v428
    %556 = vmatpush1.bf16.msra.mxu0 %v427
    %557 = vmatprep.subr.bf16.mxu0 %v430
    %558 = vmatpush1.bf16.msra.mxu0 %v429
    %559 = vmatprep.subr.bf16.mxu0 %v432
    %560 = vmatpush1.bf16.msra.mxu0 %v431
    %561 = vmatprep.subr.bf16.mxu0 %v434
    %562 = vmatpush1.bf16.msra.mxu0 %v433
    %563 = vmatprep.subr.bf16.mxu0 %v436
    %564 = vmatpush1.bf16.msra.mxu0 %v435
    %565 = vmatprep.subr.bf16.mxu0 %v438
    %566 = vmatpush1.bf16.msra.mxu0 %v437
    %567 = vmatprep.subr.bf16.mxu0 %v440
    %568 = vmatpush1.bf16.msra.mxu0 %v439
    %569 = vmatprep.subr.bf16.mxu0 %v442
    %570 = vmatpush1.bf16.msra.mxu0 %v441
    %571 = vmatprep.subr.bf16.mxu0 %v444
    %572 = vmatpush1.bf16.msra.mxu0 %v443
    %573 = vmatprep.subr.bf16.mxu0 %v446
    %574 = vmatpush1.bf16.msra.mxu0 %v445
    %575 = vmatprep.subr.bf16.mxu0 %v448
    %576 = vmatpush1.bf16.msra.mxu0 %v447
    %577 = vmatprep.subr.bf16.mxu0 %v450
    %578 = vmatpush1.bf16.msra.mxu0 %v449
    %579 = vmatprep.subr.bf16.mxu0 %v452
    %580 = vmatpush1.bf16.msra.mxu0 %v451
    %581 = vmatprep.subr.bf16.mxu0 %v454
    %582 = vmatpush1.bf16.msra.mxu0 %v453
    %583 = vmatprep.mubr.bf16.mxu0 %v208
    %584 = vmatmul.mubr.bf16.gmra.mrb[0].mxu0 %v207
    %v585 = vpop.f32.mrb[0].mxu0
    %v586 = vadd.f32 %v164, %v585
    %v587 = vpop.f32.mrb[0].mxu0
    %v588 = vadd.f32 %v168, %v587
    %v589 = vpop.f32.mrb[0].mxu0
    %v590 = vadd.f32 %v164, %v589
    %v591 = vpop.f32.mrb[0].mxu0
    %v592 = vadd.f32 %v168, %v591
    %593 = vmatprep.mubr.bf16.mxu0 %v212
    %594 = vmatmul.mubr.bf16.gmra.mrb[0].mxu0 %v211
    %v595 = vpop.f32.mrb[0].mxu0
    %v596 = vadd.f32 %v164, %v595
    %v597 = vpop.f32.mrb[0].mxu0
    %v598 = vadd.f32 %v168, %v597
    %v599 = vpop.f32.mrb[0].mxu0
    %v600 = vadd.f32 %v164, %v599
    %v601 = vpop.f32.mrb[0].mxu0
    %v602 = vadd.f32 %v168, %v601
    %603 = vmatprep.mubr.bf16.mxu0 %v216
    %604 = vmatmul.mubr.bf16.gmra.mrb[0].mxu0 %v215
    %v605 = vpop.f32.mrb[0].mxu0
    %v606 = vadd.f32 %v164, %v605
    %v607 = vpop.f32.mrb[0].mxu0
    %v608 = vadd.f32 %v168, %v607
    %v609 = vpop.f32.mrb[0].mxu0
    %v610 = vadd.f32 %v164, %v609
    %v611 = vpop.f32.mrb[0].mxu0
    %v612 = vadd.f32 %v168, %v611
    %613 = vdwg.mxu0
    %614 = vmatprep.subr.bf16.mxu0 %v456
    %615 = vmatpush1.bf16.msra.mxu0 %v455
    %616 = vmatprep.subr.bf16.mxu0 %v458
    %617 = vmatpush1.bf16.msra.mxu0 %v457
    %618 = vmatprep.subr.bf16.mxu0 %v460
    %619 = vmatpush1.bf16.msra.mxu0 %v459
    %620 = vmatprep.subr.bf16.mxu0 %v462
    %621 = vmatpush1.bf16.msra.mxu0 %v461
    %622 = vmatprep.subr.bf16.mxu0 %v464
    %623 = vmatpush1.bf16.msra.mxu0 %v463
    %624 = vmatprep.subr.bf16.mxu0 %v466
    %625 = vmatpush1.bf16.msra.mxu0 %v465
    %626 = vmatprep.subr.bf16.mxu0 %v468
    %627 = vmatpush1.bf16.msra.mxu0 %v467
    %628 = vmatprep.subr.bf16.mxu0 %v470
    %629 = vmatpush1.bf16.msra.mxu0 %v469
    %630 = vmatprep.subr.bf16.mxu0 %v472
    %631 = vmatpush1.bf16.msra.mxu0 %v471
    %632 = vmatprep.subr.bf16.mxu0 %v474
    %633 = vmatpush1.bf16.msra.mxu0 %v473
    %634 = vmatprep.subr.bf16.mxu0 %v476
    %635 = vmatpush1.bf16.msra.mxu0 %v475
    %636 = vmatprep.subr.bf16.mxu0 %v478
    %637 = vmatpush1.bf16.msra.mxu0 %v477
    %638 = vmatprep.subr.bf16.mxu0 %v480
    %639 = vmatpush1.bf16.msra.mxu0 %v479
    %640 = vmatprep.subr.bf16.mxu0 %v482
    %641 = vmatpush1.bf16.msra.mxu0 %v481
    %642 = vmatprep.subr.bf16.mxu0 %v484
    %643 = vmatpush1.bf16.msra.mxu0 %v483
    %644 = vmatprep.subr.bf16.mxu0 %v486
    %645 = vmatpush1.bf16.msra.mxu0 %v485
    %646 = vmatprep.mubr.bf16.mxu0 %v210
    %647 = vmatmul.mubr.bf16.gmra.mrb[0].mxu0 %v209
    %v648 = vpop.f32.mrb[0].mxu0
    %v649 = vadd.f32 %v586, %v648
    %v650 = vpop.f32.mrb[0].mxu0
    %v651 = vadd.f32 %v588, %v650
    %v652 = vpop.f32.mrb[0].mxu0
    %v653 = vadd.f32 %v590, %v652
    %v654 = vpop.f32.mrb[0].mxu0
    %v655 = vadd.f32 %v592, %v654
    %656 = vmatprep.mubr.bf16.mxu0 %v214
    %657 = vmatmul.mubr.bf16.gmra.mrb[0].mxu0 %v213
    %v658 = vpop.f32.mrb[0].mxu0
    %v659 = vadd.f32 %v596, %v658
    %v660 = vpop.f32.mrb[0].mxu0
    %v661 = vadd.f32 %v598, %v660
    %v662 = vpop.f32.mrb[0].mxu0
    %v663 = vadd.f32 %v600, %v662
    %v664 = vpop.f32.mrb[0].mxu0
    %v665 = vadd.f32 %v602, %v664
    %666 = vmatprep.mubr.bf16.mxu0 %v218
    %667 = vmatmul.mubr.bf16.gmra.mrb[0].mxu0 %v217
    %v668 = vpop.f32.mrb[0].mxu0
    %v669 = vadd.f32 %v606, %v668
    %v670 = vpop.f32.mrb[0].mxu0
    %v671 = vadd.f32 %v608, %v670
    %v672 = vpop.f32.mrb[0].mxu0
    %v673 = vadd.f32 %v610, %v672
    %v674 = vpop.f32.mrb[0].mxu0
    %v675 = vadd.f32 %v612, %v674
    %676 = vdwg.mxu0
    %v677 = vmax.f32 %v649, 0.0
    %v678 = vmax.f32 %v651, 0.0
    %v679 = vmax.f32 %v653, 0.0
    %v680 = vmax.f32 %v655, 0.0
    %v681 = vmax.f32 %v659, 0.0
    %v682 = vmax.f32 %v661, 0.0
    %v683 = vmax.f32 %v663, 0.0
    %v684 = vmax.f32 %v665, 0.0
    %v685 = vmax.f32 %v669, 0.0
    %v686 = vmax.f32 %v671, 0.0
    %v687 = vmax.f32 %v673, 0.0
    %v688 = vmax.f32 %v675, 0.0
    %v689 = vpack.c.bf16 %v679, %v677
    %v690 = vpack.c.bf16 %v680, %v678
    %v691 = vpack.c.bf16 %v683, %v681
    %v692 = vpack.c.bf16 %v684, %v682
    %v693 = vpack.c.bf16 %v687, %v685
    %v694 = vpack.c.bf16 %v688, %v686
    %v695 = vld [vmem:[#allocation7] sm:$0xff]
    %v696 = vld [vmem:[#allocation7 + $0x8] sm:$0xff]
    %v697 = vld [vmem:[#allocation7 + $0x10] sm:$0xff]
    %v698 = vld [vmem:[#allocation7 + $0x18] sm:$0xff]
    %v699 = vld [vmem:[#allocation7 + $0x20] sm:$0xff]
    %v700 = vld [vmem:[#allocation7 + $0x28] sm:$0xff]
    %v701 = vld [vmem:[#allocation7 + $0x30] sm:$0xff]
    %v702 = vld [vmem:[#allocation7 + $0x38] sm:$0xff]
    %v703 = vld [vmem:[#allocation7 + $0x40] sm:$0xff]
    %v704 = vld [vmem:[#allocation7 + $0x48] sm:$0xff]
    %v705 = vld [vmem:[#allocation7 + $0x50] sm:$0xff]
    %v706 = vld [vmem:[#allocation7 + $0x58] sm:$0xff]
    %v707 = vld [vmem:[#allocation7 + $0x60] sm:$0xff]
    %v708 = vld [vmem:[#allocation7 + $0x68] sm:$0xff]
    %v709 = vld [vmem:[#allocation7 + $0x70] sm:$0xff]
    %v710 = vld [vmem:[#allocation7 + $0x78] sm:$0xff]
    %v711 = vld [vmem:[#allocation7 + $0x80] sm:$0xff]
    %v712 = vld [vmem:[#allocation7 + $0x88] sm:$0xff]
    %v713 = vld [vmem:[#allocation7 + $0x90] sm:$0xff]
    %v714 = vld [vmem:[#allocation7 + $0x98] sm:$0xff]
    %v715 = vld [vmem:[#allocation7 + $0xa0] sm:$0xff]
    %v716 = vld [vmem:[#allocation7 + $0xa8] sm:$0xff]
    %v717 = vld [vmem:[#allocation7 + $0xb0] sm:$0xff]
    %v718 = vld [vmem:[#allocation7 + $0xb8] sm:$0xff]
    %v719 = vld [vmem:[#allocation7 + $0xc0] sm:$0xff]
    %v720 = vld [vmem:[#allocation7 + $0xc8] sm:$0xff]
    %v721 = vld [vmem:[#allocation7 + $0xd0] sm:$0xff]
    %v722 = vld [vmem:[#allocation7 + $0xd8] sm:$0xff]
    %v723 = vld [vmem:[#allocation7 + $0xe0] sm:$0xff]
    %v724 = vld [vmem:[#allocation7 + $0xe8] sm:$0xff]
    %v725 = vld [vmem:[#allocation7 + $0xf0] sm:$0xff]
    %v726 = vld [vmem:[#allocation7 + $0xf8] sm:$0xff]
    %v727 = vld [vmem:[%s4] sm:$0x3]
    %v729 = vlaneseq
    %v730 = vshrl.u32 %v729, 7
    %v731 = vsub.s32 0, %v730
    %v732 = vrot.slane %v727, %v731
    %v733 = vlaneseq
    %v734 = vshrl.u32 %v733, 7
    %v735 = vsub.s32 1, %v734
    %v736 = vrot.slane %v727, %v735
    %v771 = vunpack.c.l.b16 %v695
    %v772 = vunpack.c.h.b16 %v695
    %v773 = vunpack.c.l.b16 %v696
    %v774 = vunpack.c.h.b16 %v696
    %v775 = vunpack.c.l.b16 %v697
    %v776 = vunpack.c.h.b16 %v697
    %v777 = vunpack.c.l.b16 %v698
    %v778 = vunpack.c.h.b16 %v698
    %v779 = vunpack.c.l.b16 %v699
    %v780 = vunpack.c.h.b16 %v699
    %v781 = vunpack.c.l.b16 %v700
    %v782 = vunpack.c.h.b16 %v700
    %v783 = vunpack.c.l.b16 %v701
    %v784 = vunpack.c.h.b16 %v701
    %v785 = vunpack.c.l.b16 %v702
    %v786 = vunpack.c.h.b16 %v702
    %v787 = vunpack.c.l.b16 %v703
    %v788 = vunpack.c.h.b16 %v703
    %v789 = vunpack.c.l.b16 %v704
    %v790 = vunpack.c.h.b16 %v704
    %v791 = vunpack.c.l.b16 %v705
    %v792 = vunpack.c.h.b16 %v705
    %v793 = vunpack.c.l.b16 %v706
    %v794 = vunpack.c.h.b16 %v706
    %v795 = vunpack.c.l.b16 %v707
    %v796 = vunpack.c.h.b16 %v707
    %v797 = vunpack.c.l.b16 %v708
    %v798 = vunpack.c.h.b16 %v708
    %v799 = vunpack.c.l.b16 %v709
    %v800 = vunpack.c.h.b16 %v709
    %v801 = vunpack.c.l.b16 %v710
    %v802 = vunpack.c.h.b16 %v710
    %v803 = vunpack.c.l.b16 %v711
    %v804 = vunpack.c.h.b16 %v711
    %v805 = vunpack.c.l.b16 %v712
    %v806 = vunpack.c.h.b16 %v712
    %v807 = vunpack.c.l.b16 %v713
    %v808 = vunpack.c.h.b16 %v713
    %v809 = vunpack.c.l.b16 %v714
    %v810 = vunpack.c.h.b16 %v714
    %v811 = vunpack.c.l.b16 %v715
    %v812 = vunpack.c.h.b16 %v715
    %v813 = vunpack.c.l.b16 %v716
    %v814 = vunpack.c.h.b16 %v716
    %v815 = vunpack.c.l.b16 %v717
    %v816 = vunpack.c.h.b16 %v717
    %v817 = vunpack.c.l.b16 %v718
    %v818 = vunpack.c.h.b16 %v718
    %v819 = vunpack.c.l.b16 %v719
    %v820 = vunpack.c.h.b16 %v719
    %v821 = vunpack.c.l.b16 %v720
    %v822 = vunpack.c.h.b16 %v720
    %v823 = vunpack.c.l.b16 %v721
    %v824 = vunpack.c.h.b16 %v721
    %v825 = vunpack.c.l.b16 %v722
    %v826 = vunpack.c.h.b16 %v722
    %v827 = vunpack.c.l.b16 %v723
    %v828 = vunpack.c.h.b16 %v723
    %v829 = vunpack.c.l.b16 %v724
    %v830 = vunpack.c.h.b16 %v724
    %v831 = vunpack.c.l.b16 %v725
    %v832 = vunpack.c.h.b16 %v725
    %v833 = vunpack.c.l.b16 %v726
    %v834 = vunpack.c.h.b16 %v726
    %v835 = vpack.c.b16 %v773, %v771
    %v836 = vpack.c.b16 %v774, %v772
    %v837 = vpack.c.b16 %v777, %v775
    %v838 = vpack.c.b16 %v778, %v776
    %v839 = vpack.c.b16 %v781, %v779
    %v840 = vpack.c.b16 %v782, %v780
    %v841 = vpack.c.b16 %v785, %v783
    %v842 = vpack.c.b16 %v786, %v784
    %v843 = vpack.c.b16 %v789, %v787
    %v844 = vpack.c.b16 %v790, %v788
    %v845 = vpack.c.b16 %v793, %v791
    %v846 = vpack.c.b16 %v794, %v792
    %v847 = vpack.c.b16 %v797, %v795
    %v848 = vpack.c.b16 %v798, %v796
    %v849 = vpack.c.b16 %v801, %v799
    %v850 = vpack.c.b16 %v802, %v800
    %v851 = vpack.c.b16 %v805, %v803
    %v852 = vpack.c.b16 %v806, %v804
    %v853 = vpack.c.b16 %v809, %v807
    %v854 = vpack.c.b16 %v810, %v808
    %v855 = vpack.c.b16 %v813, %v811
    %v856 = vpack.c.b16 %v814, %v812
    %v857 = vpack.c.b16 %v817, %v815
    %v858 = vpack.c.b16 %v818, %v816
    %v859 = vpack.c.b16 %v821, %v819
    %v860 = vpack.c.b16 %v822, %v820
    %v861 = vpack.c.b16 %v825, %v823
    %v862 = vpack.c.b16 %v826, %v824
    %v863 = vpack.c.b16 %v829, %v827
    %v864 = vpack.c.b16 %v830, %v828
    %v865 = vpack.c.b16 %v833, %v831
    %v866 = vpack.c.b16 %v834, %v832
    %899 = vmatprep.subr.bf16.mxu0 %v836
    %900 = vmatpush1.bf16.msra.mxu0 %v835
    %901 = vmatprep.subr.bf16.mxu0 %v838
    %902 = vmatpush1.bf16.msra.mxu0 %v837
    %903 = vmatprep.subr.bf16.mxu0 %v840
    %904 = vmatpush1.bf16.msra.mxu0 %v839
    %905 = vmatprep.subr.bf16.mxu0 %v842
    %906 = vmatpush1.bf16.msra.mxu0 %v841
    %907 = vmatprep.subr.bf16.mxu0 %v844
    %908 = vmatpush1.bf16.msra.mxu0 %v843
    %909 = vmatprep.subr.bf16.mxu0 %v846
    %910 = vmatpush1.bf16.msra.mxu0 %v845
    %911 = vmatprep.subr.bf16.mxu0 %v848
    %912 = vmatpush1.bf16.msra.mxu0 %v847
    %913 = vmatprep.subr.bf16.mxu0 %v850
    %914 = vmatpush1.bf16.msra.mxu0 %v849
    %915 = vmatprep.subr.bf16.mxu0 %v852
    %916 = vmatpush1.bf16.msra.mxu0 %v851
    %917 = vmatprep.subr.bf16.mxu0 %v854
    %918 = vmatpush1.bf16.msra.mxu0 %v853
    %919 = vmatprep.subr.bf16.mxu0 %v856
    %920 = vmatpush1.bf16.msra.mxu0 %v855
    %921 = vmatprep.subr.bf16.mxu0 %v858
    %922 = vmatpush1.bf16.msra.mxu0 %v857
    %923 = vmatprep.subr.bf16.mxu0 %v860
    %924 = vmatpush1.bf16.msra.mxu0 %v859
    %925 = vmatprep.subr.bf16.mxu0 %v862
    %926 = vmatpush1.bf16.msra.mxu0 %v861
    %927 = vmatprep.subr.bf16.mxu0 %v864
    %928 = vmatpush1.bf16.msra.mxu0 %v863
    %929 = vmatprep.subr.bf16.mxu0 %v866
    %930 = vmatpush1.bf16.msra.mxu0 %v865
    %931 = vmatprep.mubr.bf16.mxu0 %v690
    %932 = vmatmul.mubr.bf16.gmra.mrb[0].mxu0 %v689
    %v933 = vpop.f32.mrb[0].mxu0
    %v934 = vadd.f32 %v732, %v933
    %v935 = vpop.f32.mrb[0].mxu0
    %v936 = vadd.f32 %v736, %v935
    %v937 = vpop.f32.mrb[0].mxu0
    %v938 = vadd.f32 %v732, %v937
    %v939 = vpop.f32.mrb[0].mxu0
    %v940 = vadd.f32 %v736, %v939
    %941 = vmatprep.mubr.bf16.mxu0 %v692
    %942 = vmatmul.mubr.bf16.gmra.mrb[0].mxu0 %v691
    %v943 = vpop.f32.mrb[0].mxu0
    %v944 = vadd.f32 %v732, %v943
    %v945 = vpop.f32.mrb[0].mxu0
    %v946 = vadd.f32 %v736, %v945
    %v947 = vpop.f32.mrb[0].mxu0
    %v948 = vadd.f32 %v732, %v947
    %v949 = vpop.f32.mrb[0].mxu0
    %v950 = vadd.f32 %v736, %v949
    %951 = vmatprep.mubr.bf16.mxu0 %v694
    %952 = vmatmul.mubr.bf16.gmra.mrb[0].mxu0 %v693
    %v953 = vpop.f32.mrb[0].mxu0
    %v954 = vadd.f32 %v732, %v953
    %v955 = vpop.f32.mrb[0].mxu0
    %v956 = vadd.f32 %v736, %v955
    %v957 = vpop.f32.mrb[0].mxu0
    %v958 = vadd.f32 %v732, %v957
    %v959 = vpop.f32.mrb[0].mxu0
    %v960 = vadd.f32 %v736, %v959
    %961 = vdwg.mxu0
    %v962 = vmax.f32 %v934, 0.0
    %v963 = vmax.f32 %v936, 0.0
    %v964 = vmax.f32 %v938, 0.0
    %v965 = vmax.f32 %v940, 0.0
    %v966 = vmax.f32 %v944, 0.0
    %v967 = vmax.f32 %v946, 0.0
    %v968 = vmax.f32 %v948, 0.0
    %v969 = vmax.f32 %v950, 0.0
    %v970 = vmax.f32 %v954, 0.0
    %v971 = vmax.f32 %v956, 0.0
    %v972 = vmax.f32 %v958, 0.0
    %v973 = vmax.f32 %v960, 0.0
    %v974 = vpack.c.bf16 %v964, %v962
    %v975 = vpack.c.bf16 %v965, %v963
    %v976 = vpack.c.bf16 %v968, %v966
    %v977 = vpack.c.bf16 %v969, %v967
    %v978 = vpack.c.bf16 %v972, %v970
    %v979 = vpack.c.bf16 %v973, %v971
    %v980 = vld [vmem:[#allocation8] sm:$0xf]
    %v981 = vld [vmem:[#allocation8 + $0x4] sm:$0xf]
    %v982 = vld [vmem:[#allocation8 + $0x8] sm:$0xf]
    %v983 = vld [vmem:[#allocation8 + $0xc] sm:$0xf]
    %v984 = vld [vmem:[#allocation8 + $0x10] sm:$0xf]
    %v985 = vld [vmem:[#allocation8 + $0x14] sm:$0xf]
    %v986 = vld [vmem:[#allocation8 + $0x18] sm:$0xf]
    %v987 = vld [vmem:[#allocation8 + $0x1c] sm:$0xf]
    %v988 = vld [vmem:[#allocation8 + $0x20] sm:$0xf]
    %v989 = vld [vmem:[#allocation8 + $0x24] sm:$0xf]
    %v990 = vld [vmem:[#allocation8 + $0x28] sm:$0xf]
    %v991 = vld [vmem:[#allocation8 + $0x2c] sm:$0xf]
    %v992 = vld [vmem:[#allocation8 + $0x30] sm:$0xf]
    %v993 = vld [vmem:[#allocation8 + $0x34] sm:$0xf]
    %v994 = vld [vmem:[#allocation8 + $0x38] sm:$0xf]
    %v995 = vld [vmem:[#allocation8 + $0x3c] sm:$0xf]
    %v996 = vld [vmem:[#allocation8 + $0x40] sm:$0xf]
    %v997 = vld [vmem:[#allocation8 + $0x44] sm:$0xf]
    %v998 = vld [vmem:[#allocation8 + $0x48] sm:$0xf]
    %v999 = vld [vmem:[#allocation8 + $0x4c] sm:$0xf]
    %v1000 = vld [vmem:[#allocation8 + $0x50] sm:$0xf]
    %v1001 = vld [vmem:[#allocation8 + $0x54] sm:$0xf]
    %v1002 = vld [vmem:[#allocation8 + $0x58] sm:$0xf]
    %v1003 = vld [vmem:[#allocation8 + $0x5c] sm:$0xf]
    %v1004 = vld [vmem:[#allocation8 + $0x60] sm:$0xf]
    %v1005 = vld [vmem:[#allocation8 + $0x64] sm:$0xf]
    %v1006 = vld [vmem:[#allocation8 + $0x68] sm:$0xf]
    %v1007 = vld [vmem:[#allocation8 + $0x6c] sm:$0xf]
    %v1008 = vld [vmem:[#allocation8 + $0x70] sm:$0xf]
    %v1009 = vld [vmem:[#allocation8 + $0x74] sm:$0xf]
    %v1010 = vld [vmem:[#allocation8 + $0x78] sm:$0xf]
    %v1011 = vld [vmem:[#allocation8 + $0x7c] sm:$0xf]
    %v1012 = vld [vmem:[%s6] sm:$0x1]
    %v1014 = vlaneseq
    %v1015 = vshrl.u32 %v1014, 7
    %v1016 = vsub.s32 0, %v1015
    %v1017 = vrot.slane %v1012, %v1016
    %v1051 = vunpack.c.l.b16 %v980
    %v1052 = vunpack.c.l.b16 %v981
    %v1053 = vunpack.c.l.b16 %v982
    %v1054 = vunpack.c.l.b16 %v983
    %v1055 = vunpack.c.l.b16 %v984
    %v1056 = vunpack.c.l.b16 %v985
    %v1057 = vunpack.c.l.b16 %v986
    %v1058 = vunpack.c.l.b16 %v987
    %v1059 = vunpack.c.l.b16 %v988
    %v1060 = vunpack.c.l.b16 %v989
    %v1061 = vunpack.c.l.b16 %v990
    %v1062 = vunpack.c.l.b16 %v991
    %v1063 = vunpack.c.l.b16 %v992
    %v1064 = vunpack.c.l.b16 %v993
    %v1065 = vunpack.c.l.b16 %v994
    %v1066 = vunpack.c.l.b16 %v995
    %v1067 = vunpack.c.l.b16 %v996
    %v1068 = vunpack.c.l.b16 %v997
    %v1069 = vunpack.c.l.b16 %v998
    %v1070 = vunpack.c.l.b16 %v999
    %v1071 = vunpack.c.l.b16 %v1000
    %v1072 = vunpack.c.l.b16 %v1001
    %v1073 = vunpack.c.l.b16 %v1002
    %v1074 = vunpack.c.l.b16 %v1003
    %v1075 = vunpack.c.l.b16 %v1004
    %v1076 = vunpack.c.l.b16 %v1005
    %v1077 = vunpack.c.l.b16 %v1006
    %v1078 = vunpack.c.l.b16 %v1007
    %v1079 = vunpack.c.l.b16 %v1008
    %v1080 = vunpack.c.l.b16 %v1009
    %v1081 = vunpack.c.l.b16 %v1010
    %v1082 = vunpack.c.l.b16 %v1011
    %v1083 = vpack.c.b16 %v1052, %v1051
    %v1084 = vpack.c.b16 %v1054, %v1053
    %v1085 = vpack.c.b16 %v1056, %v1055
    %v1086 = vpack.c.b16 %v1058, %v1057
    %v1087 = vpack.c.b16 %v1060, %v1059
    %v1088 = vpack.c.b16 %v1062, %v1061
    %v1089 = vpack.c.b16 %v1064, %v1063
    %v1090 = vpack.c.b16 %v1066, %v1065
    %v1091 = vpack.c.b16 %v1068, %v1067
    %v1092 = vpack.c.b16 %v1070, %v1069
    %v1093 = vpack.c.b16 %v1072, %v1071
    %v1094 = vpack.c.b16 %v1074, %v1073
    %v1095 = vpack.c.b16 %v1076, %v1075
    %v1096 = vpack.c.b16 %v1078, %v1077
    %v1097 = vpack.c.b16 %v1080, %v1079
    %v1098 = vpack.c.b16 %v1082, %v1081
    %1115 = vmatprep.subr.bf16.mxu0 0
    %1116 = vmatpush1.bf16.msra.mxu0 %v1083
    %1117 = vmatprep.subr.bf16.mxu0 0
    %1118 = vmatpush1.bf16.msra.mxu0 %v1084
    %1119 = vmatprep.subr.bf16.mxu0 0
    %1120 = vmatpush1.bf16.msra.mxu0 %v1085
    %1121 = vmatprep.subr.bf16.mxu0 0
    %1122 = vmatpush1.bf16.msra.mxu0 %v1086
    %1123 = vmatprep.subr.bf16.mxu0 0
    %1124 = vmatpush1.bf16.msra.mxu0 %v1087
    %1125 = vmatprep.subr.bf16.mxu0 0
    %1126 = vmatpush1.bf16.msra.mxu0 %v1088
    %1127 = vmatprep.subr.bf16.mxu0 0
    %1128 = vmatpush1.bf16.msra.mxu0 %v1089
    %1129 = vmatprep.subr.bf16.mxu0 0
    %1130 = vmatpush1.bf16.msra.mxu0 %v1090
    %1131 = vmatprep.subr.bf16.mxu0 0
    %1132 = vmatpush1.bf16.msra.mxu0 %v1091
    %1133 = vmatprep.subr.bf16.mxu0 0
    %1134 = vmatpush1.bf16.msra.mxu0 %v1092
    %1135 = vmatprep.subr.bf16.mxu0 0
    %1136 = vmatpush1.bf16.msra.mxu0 %v1093
    %1137 = vmatprep.subr.bf16.mxu0 0
    %1138 = vmatpush1.bf16.msra.mxu0 %v1094
    %1139 = vmatprep.subr.bf16.mxu0 0
    %1140 = vmatpush1.bf16.msra.mxu0 %v1095
    %1141 = vmatprep.subr.bf16.mxu0 0
    %1142 = vmatpush1.bf16.msra.mxu0 %v1096
    %1143 = vmatprep.subr.bf16.mxu0 0
    %1144 = vmatpush1.bf16.msra.mxu0 %v1097
    %1145 = vmatprep.subr.bf16.mxu0 0
    %1146 = vmatpush1.bf16.msra.mxu0 %v1098
    %1147 = vmatprep.mubr.bf16.mxu0 %v975
    %1148 = vmatmul.mubr.bf16.gmra.mrb[0].mxu0 %v974
    %v1149 = vpop.f32.mrb[0].mxu0
    %v1150 = vadd.f32 %v1017, %v1149
    %v1151 = vpop.f32.mrb[0].mxu0
    %v1152 = vpop.f32.mrb[0].mxu0
    %v1153 = vadd.f32 %v1017, %v1152
    %v1154 = vpop.f32.mrb[0].mxu0
    %1155 = vmatprep.mubr.bf16.mxu0 %v977
    %1156 = vmatmul.mubr.bf16.gmra.mrb[0].mxu0 %v976
    %v1157 = vpop.f32.mrb[0].mxu0
    %v1158 = vadd.f32 %v1017, %v1157
    %v1159 = vpop.f32.mrb[0].mxu0
    %v1160 = vpop.f32.mrb[0].mxu0
    %v1161 = vadd.f32 %v1017, %v1160
    %v1162 = vpop.f32.mrb[0].mxu0
    %1163 = vmatprep.mubr.bf16.mxu0 %v979
    %1164 = vmatmul.mubr.bf16.gmra.mrb[0].mxu0 %v978
    %v1165 = vpop.f32.mrb[0].mxu0
    %v1166 = vadd.f32 %v1017, %v1165
    %v1167 = vpop.f32.mrb[0].mxu0
    %v1168 = vpop.f32.mrb[0].mxu0
    %v1169 = vadd.f32 %v1017, %v1168
    %v1170 = vpop.f32.mrb[0].mxu0
    %1171 = vdwg.mxu0
    %1172 = vst [vmem:[#allocation10] sm:$0xff] %v1150
    %1173 = vst [vmem:[#allocation10 + $0x8] sm:$0xff] %v1153
    %1174 = vst [vmem:[#allocation10 + $0x10] sm:$0xff] %v1158
    %1175 = vst [vmem:[#allocation10 + $0x18] sm:$0xff] %v1161
    %1176 = vst [vmem:[#allocation10 + $0x20] sm:$0xff] %v1166
    %1177 = vst [vmem:[#allocation10 + $0x28] sm:$0xff] %v1169
    // Predicated region
    $region46: #{tpu_custom_call.1} parent=1 // pred_check
      _
    $region47: #{tpu_custom_call.1} parent=1 // pred_check_branch
      %1179 = sbr.rel (0) target = $region49
    $region48: #{tpu_custom_call.1} parent=1 // pred_region
      %s1181 = ssub.s32 768, 768
      %1182 = vsyncadd [#allocation4], %s1181
      %s1183 = sshll.u32 [#allocation10], 4
      %s1184 = int_to_ptr.vmem [resolvable:$true] %s1183
      %1189 = dma.vmem_to_hbm [thread:$0]  %s1184, 768, %s7, [#allocation4], 128, 128, 8
    $region49: #{tpu_custom_call.1} parent=1 // pred_fallthru
      _
    // Predicated region
    $region50: #{tpu_custom_call.1} parent=1 // pred_check
      _
    $region51: #{tpu_custom_call.1} parent=1 // pred_check_branch
      %1191 = sbr.rel (0) target = $region53
    $region52: #{tpu_custom_call.1} parent=1 // pred_region
      %1192 = dma.done [#allocation4], 768
    $region53: #{tpu_custom_call.1} parent=1 // pred_fallthru
      _
    %1193 = vsyncpa [#allocation3], 1
    %1194 = vsyncpa [#allocation6], 1
    %1195 = vsyncpa [#allocation9], 1
    %1196 = vsyncpa [#allocation4], 1

</llo_original>
